<compile_context>
chip_gen: v6e
topology: v6e:2x2x1
jax: 0.10.0
libtpu: 0.0.40
codegen_flags: <defaults>
</compile_context>

<pallas_src>
import functools

import jax
import jax.numpy as jnp
from jax.experimental import pallas as pl
from jax.experimental.pallas import tpu as pltpu

LN_EPS = 1e-5
DROP_P = 0.1
_KEEP_SCALE = 1.0 / (1.0 - DROP_P)


def _round_up(x, m):
    return ((x + m - 1) // m) * m


def _cdiv(a, b):
    return (a + b - 1) // b


def _layer_norm(h, gamma, beta, n_valid):
    # One-pass variance over the true (un-padded) feature count. Padded lanes of h are exactly 0
    # and gamma/beta are zero-padded, so this equals the un-padded LayerNorm and padded lanes stay
    # 0 on output. Variance clamped at 0 to protect rsqrt against f32 cancellation.
    inv_n = 1.0 / float(n_valid)
    mu = jnp.sum(h, axis=-1, keepdims=True) * inv_n
    meansq = jnp.sum(h * h, axis=-1, keepdims=True) * inv_n
    var = jnp.maximum(meansq - mu * mu, 0.0)
    return (h - mu) * jax.lax.rsqrt(var + LN_EPS) * gamma + beta


def mlp3_kernel(*refs, training: bool, l_valid: int):
    if training:
        x_ref, w1_ref, vec_ref, w2_ref, w3_ref, b3_ref, m1_ref, m2_ref, o_ref = refs
    else:
        x_ref, w1_ref, vec_ref, w2_ref, w3_ref, b3_ref, o_ref = refs

    bf16 = jnp.bfloat16
    vec = vec_ref[...]                      # (8, l_p) f32: rows 0..5 = b1, g1, be1, b2, g2, be2
    b1, g1, be1 = vec[0:1, :], vec[1:2, :], vec[2:3, :]
    b2, g2, be2 = vec[3:4, :], vec[4:5, :], vec[5:6, :]

    # --- block 1: Linear -> LayerNorm -> ReLU -> Dropout ---
    h = jnp.dot(x_ref[...].astype(bf16), w1_ref[...], preferred_element_type=jnp.float32) + b1
    h = _layer_norm(h, g1, be1, l_valid)
    h = jnp.maximum(h, 0.0)
    if training:
        h = h * m1_ref[...]                 # mask already carries the 1/(1-p) keep-scale

    # --- block 2: Linear -> LayerNorm -> ReLU -> Dropout ---
    h = jnp.dot(h.astype(bf16), w2_ref[...], preferred_element_type=jnp.float32) + b2
    h = _layer_norm(h, g2, be2, l_valid)
    h = jnp.maximum(h, 0.0)
    if training:
        h = h * m2_ref[...]

    # --- block 3: Linear ---
    out = jnp.dot(h.astype(bf16), w3_ref[...], preferred_element_type=jnp.float32) + b3_ref[...]
    o_ref[...] = out.astype(o_ref.dtype)


def _vmem_capacity_bytes():
    try:
        if jax.devices()[0].platform == "tpu":
            return int(pltpu.get_tpu_info().vmem_capacity_bytes)
    except Exception:
        pass
    return 128 * 1024 * 1024   # v5e/v6e-class default; also used for interpret/CPU fallback


def _choose_tile_b(B, cap=512):
    cap = max(8, _round_up(cap, 8))
    n_tiles = _cdiv(B, cap)
    if n_tiles == 1 and B > 8:
        n_tiles = 2            # >=2 grid steps so both v7x TensorCores get work
    return _round_up(_cdiv(B, n_tiles), 8)


def mlp3_forward(x, params, *, training=False, seed=0, tile_b_cap=512):
    """x: (B, dim_in) float32. params: dict (see init_params). Returns (B, dim_out) float32."""
    B, dim_in = x.shape
    l = params["w1"].shape[1]
    dim_out = params["w3"].shape[1]

    # ---- lane/sublane-aligned padded sizes ----
    din_p = _round_up(dim_in, 128)
    l_p = _round_up(l, 128)
    dout_p = _round_up(dim_out, 128)
    tile_b = _choose_tile_b(B, tile_b_cap)
    B_p = _round_up(B, tile_b)

    f32, bf16 = jnp.float32, jnp.bfloat16
    xp = jnp.zeros((B_p, din_p), f32).at[:B, :dim_in].set(x.astype(f32))
    w1 = jnp.zeros((din_p, l_p), bf16).at[:dim_in, :l].set(params["w1"].astype(bf16))
    w2 = jnp.zeros((l_p, l_p), bf16).at[:l, :l].set(params["w2"].astype(bf16))
    w3 = jnp.zeros((l_p, dout_p), bf16).at[:l, :dim_out].set(params["w3"].astype(bf16))
    b3 = jnp.zeros((1, dout_p), f32).at[:, :dim_out].set(params["b3"].astype(f32))

    vec = jnp.zeros((8, l_p), f32)
    for r, name in enumerate(("b1", "g1", "be1", "b2", "g2", "be2")):
        vec = vec.at[r, :l].set(params[name].astype(f32).reshape(-1))

    grid = (B_p // tile_b,)
    on_tpu = jax.devices()[0].platform == "tpu"

    def const_spec(shape):
        # Constant-index operands are never re-fetched; single-buffer them on real TPU to halve
        # their resident VMEM. (Skip the hint on non-Mosaic/interpret backends.)
        if on_tpu:
            try:
                return pl.BlockSpec(shape, lambda i: (0, 0), pipeline_mode=pl.Buffered(1))
            except TypeError:
                pass
        return pl.BlockSpec(shape, lambda i: (0, 0))

    in_specs = [
        pl.BlockSpec((tile_b, din_p), lambda i: (i, 0)),   # x: batch-tiled (streamed)
        const_spec((din_p, l_p)),                          # w1 (VMEM-resident, bf16)
        const_spec((8, l_p)),                              # packed b/gamma/beta (f32)
        const_spec((l_p, l_p)),                            # w2
        const_spec((l_p, dout_p)),                         # w3
        const_spec((1, dout_p)),                           # b3
    ]
    operands = [xp, w1, vec, w2, w3, b3]

    if training:
        # TODO(synk): torch's dropout RNG stream cannot be reproduced bit-for-bit; masks are drawn
        # with jax.random (statistically equivalent), with the 1/(1-p) keep-scale folded in so
        # dropout is a single vmul in-kernel.
        k1, k2 = jax.random.split(jax.random.PRNGKey(seed))
        m1 = jax.random.bernoulli(k1, 1.0 - DROP_P, (B_p, l_p)).astype(f32) * _KEEP_SCALE
        m2 = jax.random.bernoulli(k2, 1.0 - DROP_P, (B_p, l_p)).astype(f32) * _KEEP_SCALE
        mask_spec = pl.BlockSpec((tile_b, l_p), lambda i: (i, 0))
        in_specs += [mask_spec, mask_spec]
        operands += [m1, m2]

    out_spec = pl.BlockSpec((tile_b, dout_p), lambda i: (i, 0))

    # ---- generation-aware VMEM budget ----
    resident = 2 * (din_p * l_p + l_p * l_p + l_p * dout_p) + 4 * (8 * l_p + dout_p)  # bf16 w + f32 vec/b3
    streamed = 2 * 4 * tile_b * (din_p + dout_p)               # x + out tiles, double-buffered
    if training:
        streamed += 2 * 2 * 4 * tile_b * l_p                   # two dropout masks, double-buffered
    act_scratch = 4 * tile_b * (6 * l_p + dout_p)              # activation temporaries headroom
    budget = resident + streamed + act_scratch
    capacity = _vmem_capacity_bytes()
    if budget > int(0.85 * capacity):
        # TODO(synk): for hidden sizes whose resident weights outgrow VMEM (l ~ 4k+ on v7x), add a
        # K-tiled inner pipeline (pltpu.emit_pipeline over w2/w3) instead of the all-resident plan.
        raise NotImplementedError(
            f"resident-weight plan needs ~{budget >> 20} MiB VMEM > 85% of {capacity >> 20} MiB")
    vmem_limit = int(min(max(budget * 5 // 4, 32 * 1024 * 1024), int(0.85 * capacity)))

    kernel = functools.partial(mlp3_kernel, training=training, l_valid=l)

    out_p = pl.pallas_call(
        kernel,
        out_shape=jax.ShapeDtypeStruct((B_p, dout_p), jnp.float32),
        grid_spec=pltpu.PrefetchScalarGridSpec(
            num_scalar_prefetch=0,
            grid=grid,
            in_specs=in_specs,
            out_specs=out_spec,
        ),
        compiler_params=pltpu.CompilerParams(
            dimension_semantics=("parallel",),
            vmem_limit_bytes=vmem_limit,
        ),
    )(*operands)

    return out_p[:B, :dim_out]


def init_params(key, dim_in, l, dim_out):
    """PyTorch-style defaults: Linear ~ U(-1/sqrt(fan_in), 1/sqrt(fan_in)); LN gamma=1, beta=0.
    Linear weights stored transposed as (in_features, out_features)."""
    ks = jax.random.split(key, 6)

    def lin(kw, kb, fan_in, fan_out):
        bound = 1.0 / jnp.sqrt(fan_in)
        w = jax.random.uniform(kw, (fan_in, fan_out), jnp.float32, -bound, bound)
        b = jax.random.uniform(kb, (1, fan_out), jnp.float32, -bound, bound)
        return w, b

    w1, b1 = lin(ks[0], ks[1], dim_in, l)
    w2, b2 = lin(ks[2], ks[3], l, l)
    w3, b3 = lin(ks[4], ks[5], l, dim_out)
    ones = jnp.ones((1, l), jnp.float32)
    zeros = jnp.zeros((1, l), jnp.float32)
    return dict(w1=w1, b1=b1, g1=ones, be1=zeros,
                w2=w2, b2=b2, g2=ones.copy(), be2=zeros.copy(),
                w3=w3, b3=b3)


def reference_forward(x, p):
    """Pure-JAX eval-mode reference. Uses the same bf16 matmul inputs + f32 accumulation as the
    kernel so the comparison tolerance stays tight."""
    bf = jnp.bfloat16

    def mm(a, w):
        return jnp.dot(a.astype(bf), w.astype(bf), preferred_element_type=jnp.float32)

    def ln(h, g, b):
        mu = jnp.mean(h, -1, keepdims=True)
        var = jnp.mean((h - mu) ** 2, -1, keepdims=True)
        return (h - mu) / jnp.sqrt(var + LN_EPS) * g + b

    h = jnp.maximum(ln(mm(x, p["w1"]) + p["b1"], p["g1"], p["be1"]), 0.0)
    h = jnp.maximum(ln(mm(h, p["w2"]) + p["b2"], p["g2"], p["be2"]), 0.0)
    return mm(h, p["w3"]) + p["b3"]


if __name__ == "__main__":
    key = jax.random.PRNGKey(0)
    k_x, k_p = jax.random.split(key)

    B, dim_in, l, dim_out = 8, 16, 32, 8
    x = jax.random.normal(k_x, (B, dim_in), jnp.float32)
    params = init_params(k_p, dim_in, l, dim_out)

    # eval-mode forward (dropout = identity), matches model.eval() in PyTorch
    out = jax.block_until_ready(mlp3_forward(x, params, training=False))
    ref = reference_forward(x, params)
    assert out.shape == (B, dim_out)
    assert jnp.allclose(out, ref, atol=5e-2, rtol=5e-2), "mismatch vs JAX reference"

    # training-mode smoke test (wrapper-generated dropout masks); checks shape/finiteness.
    out_tr = jax.block_until_ready(mlp3_forward(x, params, training=True, seed=123))
    assert out_tr.shape == (B, dim_out)
    assert bool(jnp.all(jnp.isfinite(out_tr)))

    print("KERNEL_OK")
</pallas_src>

<mosaic_0001>
module attributes {stable_mosaic.version = 11 : i64} {
  func.func @mlp3_kernel(%arg0: i32, %arg1: memref<8x128xf32, #tpu.memory_space<vmem>>, %arg2: memref<128x128xbf16, #tpu.memory_space<vmem>>, %arg3: memref<8x128xf32, #tpu.memory_space<vmem>>, %arg4: memref<128x128xbf16, #tpu.memory_space<vmem>>, %arg5: memref<128x128xbf16, #tpu.memory_space<vmem>>, %arg6: memref<1x128xf32, #tpu.memory_space<vmem>>, %arg7: memref<8x128xf32, #tpu.memory_space<vmem>>) attributes {dimension_semantics = [#tpu.dimension_semantics<parallel>], iteration_bounds = array<i64: 1>, scalar_prefetch = 0 : i64, scratch_operands = 0 : i64, tpu.core_type = #tpu.core_type<tc>, window_params = [{transform_indices = @transform_0, window_bounds = array<i64: 8, 128>}, {pipeline_mode = #tpu.pipeline_mode<synchronous>, transform_indices = @transform_1, window_bounds = array<i64: 128, 128>}, {pipeline_mode = #tpu.pipeline_mode<synchronous>, transform_indices = @transform_2, window_bounds = array<i64: 8, 128>}, {pipeline_mode = #tpu.pipeline_mode<synchronous>, transform_indices = @transform_3, window_bounds = array<i64: 128, 128>}, {pipeline_mode = #tpu.pipeline_mode<synchronous>, transform_indices = @transform_4, window_bounds = array<i64: 128, 128>}, {pipeline_mode = #tpu.pipeline_mode<synchronous>, transform_indices = @transform_5, window_bounds = array<i64: 1, 128>}, {transform_indices = @transform_6, window_bounds = array<i64: 8, 128>}]} {
    %c0 = arith.constant 0 : index
    %c0_0 = arith.constant 0 : index
    %0 = vector.load %arg3[%c0, %c0_0] : memref<8x128xf32, #tpu.memory_space<vmem>>, vector<8x128xf32>
    %1 = vector.extract_strided_slice %0 {offsets = [0, 0], sizes = [1, 128], strides = [1, 1]} : vector<8x128xf32> to vector<1x128xf32>
    %2 = vector.extract_strided_slice %0 {offsets = [1, 0], sizes = [1, 128], strides = [1, 1]} : vector<8x128xf32> to vector<1x128xf32>
    %3 = vector.extract_strided_slice %0 {offsets = [2, 0], sizes = [1, 128], strides = [1, 1]} : vector<8x128xf32> to vector<1x128xf32>
    %4 = vector.extract_strided_slice %0 {offsets = [3, 0], sizes = [1, 128], strides = [1, 1]} : vector<8x128xf32> to vector<1x128xf32>
    %5 = vector.extract_strided_slice %0 {offsets = [4, 0], sizes = [1, 128], strides = [1, 1]} : vector<8x128xf32> to vector<1x128xf32>
    %6 = vector.extract_strided_slice %0 {offsets = [5, 0], sizes = [1, 128], strides = [1, 1]} : vector<8x128xf32> to vector<1x128xf32>
    %c0_1 = arith.constant 0 : index
    %c0_2 = arith.constant 0 : index
    %7 = vector.load %arg1[%c0_1, %c0_2] : memref<8x128xf32, #tpu.memory_space<vmem>>, vector<8x128xf32>
    %8 = arith.truncf %7 : vector<8x128xf32> to vector<8x128xbf16>
    %c0_3 = arith.constant 0 : index
    %c0_4 = arith.constant 0 : index
    %9 = vector.load %arg2[%c0_3, %c0_4] : memref<128x128xbf16, #tpu.memory_space<vmem>>, vector<128x128xbf16>
    %cst = arith.constant dense<0.000000e+00> : vector<8x128xf32>
    %10 = tpu.matmul %8, %9, %cst {dimension_numbers = #tpu.dot_dimension_numbers<[1], [0], [0], [1], [0, 0, 1, 1], [], []>} : vector<8x128xbf16>, vector<128x128xbf16>, vector<8x128xf32> -> vector<8x128xf32>
    %11 = vector.broadcast %1 : vector<1x128xf32> to vector<8x128xf32>
    %12 = arith.addf %10, %11 : vector<8x128xf32>
    %cst_5 = arith.constant dense<0.000000e+00> : vector<8xf32>
    %13 = vector.multi_reduction <add>, %12, %cst_5 [1] : vector<8x128xf32> to vector<8xf32>
    %14 = vector.shape_cast %13 : vector<8xf32> to vector<8x1xf32>
    %cst_6 = arith.constant 3.125000e-02 : f32
    %15 = vector.broadcast %cst_6 : f32 to vector<8x1xf32>
    %16 = arith.mulf %14, %15 : vector<8x1xf32>
    %17 = arith.mulf %12, %12 : vector<8x128xf32>
    %cst_7 = arith.constant dense<0.000000e+00> : vector<8xf32>
    %18 = vector.multi_reduction <add>, %17, %cst_7 [1] : vector<8x128xf32> to vector<8xf32>
    %19 = vector.shape_cast %18 : vector<8xf32> to vector<8x1xf32>
    %cst_8 = arith.constant 3.125000e-02 : f32
    %20 = vector.broadcast %cst_8 : f32 to vector<8x1xf32>
    %21 = arith.mulf %19, %20 : vector<8x1xf32>
    %22 = arith.mulf %16, %16 : vector<8x1xf32>
    %23 = arith.subf %21, %22 : vector<8x1xf32>
    %cst_9 = arith.constant 0.000000e+00 : f32
    %24 = vector.broadcast %cst_9 : f32 to vector<8x1xf32>
    %25 = arith.maximumf %23, %24 : vector<8x1xf32>
    %26 = vector.broadcast %16 : vector<8x1xf32> to vector<8x128xf32>
    %27 = arith.subf %12, %26 : vector<8x128xf32>
    %cst_10 = arith.constant 9.99999974E-6 : f32
    %28 = vector.broadcast %cst_10 : f32 to vector<8x1xf32>
    %29 = arith.addf %25, %28 : vector<8x1xf32>
    %30 = math.rsqrt %29 : vector<8x1xf32>
    %31 = vector.broadcast %30 : vector<8x1xf32> to vector<8x128xf32>
    %32 = arith.mulf %27, %31 : vector<8x128xf32>
    %33 = vector.broadcast %2 : vector<1x128xf32> to vector<8x128xf32>
    %34 = arith.mulf %32, %33 : vector<8x128xf32>
    %35 = vector.broadcast %3 : vector<1x128xf32> to vector<8x128xf32>
    %36 = arith.addf %34, %35 : vector<8x128xf32>
    %cst_11 = arith.constant 0.000000e+00 : f32
    %37 = vector.broadcast %cst_11 : f32 to vector<8x128xf32>
    %38 = arith.maximumf %36, %37 : vector<8x128xf32>
    %39 = arith.truncf %38 : vector<8x128xf32> to vector<8x128xbf16>
    %c0_12 = arith.constant 0 : index
    %c0_13 = arith.constant 0 : index
    %40 = vector.load %arg4[%c0_12, %c0_13] : memref<128x128xbf16, #tpu.memory_space<vmem>>, vector<128x128xbf16>
    %cst_14 = arith.constant dense<0.000000e+00> : vector<8x128xf32>
    %41 = tpu.matmul %39, %40, %cst_14 {dimension_numbers = #tpu.dot_dimension_numbers<[1], [0], [0], [1], [0, 0, 1, 1], [], []>} : vector<8x128xbf16>, vector<128x128xbf16>, vector<8x128xf32> -> vector<8x128xf32>
    %42 = vector.broadcast %4 : vector<1x128xf32> to vector<8x128xf32>
    %43 = arith.addf %41, %42 : vector<8x128xf32>
    %cst_15 = arith.constant dense<0.000000e+00> : vector<8xf32>
    %44 = vector.multi_reduction <add>, %43, %cst_15 [1] : vector<8x128xf32> to vector<8xf32>
    %45 = vector.shape_cast %44 : vector<8xf32> to vector<8x1xf32>
    %cst_16 = arith.constant 3.125000e-02 : f32
    %46 = vector.broadcast %cst_16 : f32 to vector<8x1xf32>
    %47 = arith.mulf %45, %46 : vector<8x1xf32>
    %48 = arith.mulf %43, %43 : vector<8x128xf32>
    %cst_17 = arith.constant dense<0.000000e+00> : vector<8xf32>
    %49 = vector.multi_reduction <add>, %48, %cst_17 [1] : vector<8x128xf32> to vector<8xf32>
    %50 = vector.shape_cast %49 : vector<8xf32> to vector<8x1xf32>
    %cst_18 = arith.constant 3.125000e-02 : f32
    %51 = vector.broadcast %cst_18 : f32 to vector<8x1xf32>
    %52 = arith.mulf %50, %51 : vector<8x1xf32>
    %53 = arith.mulf %47, %47 : vector<8x1xf32>
    %54 = arith.subf %52, %53 : vector<8x1xf32>
    %cst_19 = arith.constant 0.000000e+00 : f32
    %55 = vector.broadcast %cst_19 : f32 to vector<8x1xf32>
    %56 = arith.maximumf %54, %55 : vector<8x1xf32>
    %57 = vector.broadcast %47 : vector<8x1xf32> to vector<8x128xf32>
    %58 = arith.subf %43, %57 : vector<8x128xf32>
    %cst_20 = arith.constant 9.99999974E-6 : f32
    %59 = vector.broadcast %cst_20 : f32 to vector<8x1xf32>
    %60 = arith.addf %56, %59 : vector<8x1xf32>
    %61 = math.rsqrt %60 : vector<8x1xf32>
    %62 = vector.broadcast %61 : vector<8x1xf32> to vector<8x128xf32>
    %63 = arith.mulf %58, %62 : vector<8x128xf32>
    %64 = vector.broadcast %5 : vector<1x128xf32> to vector<8x128xf32>
    %65 = arith.mulf %63, %64 : vector<8x128xf32>
    %66 = vector.broadcast %6 : vector<1x128xf32> to vector<8x128xf32>
    %67 = arith.addf %65, %66 : vector<8x128xf32>
    %cst_21 = arith.constant 0.000000e+00 : f32
    %68 = vector.broadcast %cst_21 : f32 to vector<8x128xf32>
    %69 = arith.maximumf %67, %68 : vector<8x128xf32>
    %70 = arith.truncf %69 : vector<8x128xf32> to vector<8x128xbf16>
    %c0_22 = arith.constant 0 : index
    %c0_23 = arith.constant 0 : index
    %71 = vector.load %arg5[%c0_22, %c0_23] : memref<128x128xbf16, #tpu.memory_space<vmem>>, vector<128x128xbf16>
    %cst_24 = arith.constant dense<0.000000e+00> : vector<8x128xf32>
    %72 = tpu.matmul %70, %71, %cst_24 {dimension_numbers = #tpu.dot_dimension_numbers<[1], [0], [0], [1], [0, 0, 1, 1], [], []>} : vector<8x128xbf16>, vector<128x128xbf16>, vector<8x128xf32> -> vector<8x128xf32>
    %c0_25 = arith.constant 0 : index
    %c0_26 = arith.constant 0 : index
    %73 = vector.load %arg6[%c0_25, %c0_26] : memref<1x128xf32, #tpu.memory_space<vmem>>, vector<1x128xf32>
    %74 = vector.broadcast %73 : vector<1x128xf32> to vector<8x128xf32>
    %75 = arith.addf %72, %74 : vector<8x128xf32>
    %c0_27 = arith.constant 0 : index
    %c0_28 = arith.constant 0 : index
    %76 = vector.load %arg7[%c0_27, %c0_28] : memref<8x128xf32, #tpu.memory_space<vmem>>, vector<8x128xf32>
    tpu.vector_store %arg7[%c0_27, %c0_28], %75 {strides = array<i32>} : memref<8x128xf32, #tpu.memory_space<vmem>>, vector<8x128xf32>,
    return
  }
  func.func @transform_0(%arg0: i32) -> (i32, i32) {
    %c0_i32 = arith.constant 0 : i32
    %c0_i32_0 = arith.constant 0 : i32
    return %arg0, %c0_i32 : i32, i32
  }
  func.func @transform_1(%arg0: i32) -> (i32, i32) {
    %c0_i32 = arith.constant 0 : i32
    %c0_i32_0 = arith.constant 0 : i32
    %c0_i32_1 = arith.constant 0 : i32
    return %c0_i32, %c0_i32_0 : i32, i32
  }
  func.func @transform_2(%arg0: i32) -> (i32, i32) {
    %c0_i32 = arith.constant 0 : i32
    %c0_i32_0 = arith.constant 0 : i32
    %c0_i32_1 = arith.constant 0 : i32
    return %c0_i32, %c0_i32_0 : i32, i32
  }
  func.func @transform_3(%arg0: i32) -> (i32, i32) {
    %c0_i32 = arith.constant 0 : i32
    %c0_i32_0 = arith.constant 0 : i32
    %c0_i32_1 = arith.constant 0 : i32
    return %c0_i32, %c0_i32_0 : i32, i32
  }
  func.func @transform_4(%arg0: i32) -> (i32, i32) {
    %c0_i32 = arith.constant 0 : i32
    %c0_i32_0 = arith.constant 0 : i32
    %c0_i32_1 = arith.constant 0 : i32
    return %c0_i32, %c0_i32_0 : i32, i32
  }
  func.func @transform_5(%arg0: i32) -> (i32, i32) {
    %c0_i32 = arith.constant 0 : i32
    %c0_i32_0 = arith.constant 0 : i32
    %c0_i32_1 = arith.constant 0 : i32
    return %c0_i32, %c0_i32_0 : i32, i32
  }
  func.func @transform_6(%arg0: i32) -> (i32, i32) {
    %c0_i32 = arith.constant 0 : i32
    %c0_i32_0 = arith.constant 0 : i32
    return %arg0, %c0_i32 : i32, i32
  }
}

</mosaic_0001>

<llo_original>
// kernel: tpu_custom_call.1
$region0: #{tpu_custom_call.1}
  #allocation0 [shape = 'u32[]', space=smem, size = 0x4, offset = 0x4, fixed_abs, tag = 'smem constant byte address 0x4 - core index']
  #allocation1 [shape = 'u32[144,128]{1,0:T(1,128)}', space=vmem, size = 0x12000, scoped, tag = 'internal scratch']
  %s0 = inlined_call_operand.hbm [shape: f32[8,128], index: 0, kind: input, shape index: {}]
  %s1 = inlined_call_operand.hbm [shape: bf16[128,128], index: 1, kind: input, shape index: {}]
  %s2 = inlined_call_operand.hbm [shape: f32[8,128], index: 2, kind: input, shape index: {}]
  %s3 = inlined_call_operand.hbm [shape: bf16[128,128], index: 3, kind: input, shape index: {}]
  %s4 = inlined_call_operand.hbm [shape: bf16[128,128], index: 4, kind: input, shape index: {}]
  %s5 = inlined_call_operand.vmem [shape: f32[1,128], index: 5, kind: input, shape index: {}]
  %s6 = inlined_call_operand.hbm [shape: f32[8,128], index: 6, kind: output, shape index: {}]
  %s7 = sld [smem:[#allocation0]]
  $region54: #{tpu_custom_call.1} parent=0
    _
  %s9 = ssub.s32 1, %s7
  %s10 = scalar_select 0, %s9, %s7
  $region1: #{tpu_custom_call.1} parent=0
    #allocation2 [shape = 'u8[4096]{0}', space=vmem, size = 0x1000, scoped, tag = 'input window, operand 0, single buffered']
    #allocation3 [shape = 's32[1]{0}', space=sflag, size = 0x4, scoped, tag = 'scoped memory for tpu_custom_call.1']
    #allocation4 [shape = 's32[1]{0}', space=sflag, size = 0x4, scoped, tag = 'scoped memory for tpu_custom_call.1']
    #allocation5 [shape = 'u8[32768]{0}', space=vmem, size = 0x8000, scoped, tag = 'input window, operand 1, single buffered']
    #allocation6 [shape = 's32[1]{0}', space=sflag, size = 0x4, scoped, tag = 'scoped memory for tpu_custom_call.1']
    #allocation7 [shape = 'u8[4096]{0}', space=vmem, size = 0x1000, scoped, tag = 'input window, operand 2, single buffered']
    #allocation8 [shape = 'u8[32768]{0}', space=vmem, size = 0x8000, scoped, tag = 'input window, operand 3, single buffered']
    #allocation9 [shape = 's32[1]{0}', space=sflag, size = 0x4, scoped, tag = 'scoped memory for tpu_custom_call.1']
    #allocation10 [shape = 'u8[32768]{0}', space=vmem, size = 0x8000, scoped, tag = 'input window, operand 4, single buffered']
    #allocation11 [shape = 'u8[4096]{0}', space=vmem, size = 0x1000, scoped, tag = 'output window, operand 0, single buffered']
    %11 = vsyncpa [#allocation3], 0
    %12 = vsyncpa [#allocation6], 0
    %13 = vsyncpa [#allocation9], 0
    %14 = vsyncpa [#allocation4], 0
    // Predicated region
    $region2: #{tpu_custom_call.1} parent=1 // pred_check
      _
    $region3: #{tpu_custom_call.1} parent=1 // pred_check_branch
      %16 = sbr.rel (0) target = $region5
    $region4: #{tpu_custom_call.1} parent=1 // pred_region
      %s18 = ssub.s32 128, 128
      %19 = vsyncadd [#allocation3], %s18
      %s21 = sshll.u32 [#allocation2], 4
      %s22 = int_to_ptr.vmem [resolvable:$true] %s21
      %24 = dma.hbm_to_vmem [thread:$0]  %s0, 128, %s22, [#allocation3]
    $region5: #{tpu_custom_call.1} parent=1 // pred_fallthru
      _
    // Predicated region
    $region6: #{tpu_custom_call.1} parent=1 // pred_check
      _
    $region7: #{tpu_custom_call.1} parent=1 // pred_check_branch
      %26 = sbr.rel (0) target = $region9
    $region8: #{tpu_custom_call.1} parent=1 // pred_region
      %s28 = ssub.s32 1024, 1024
      %29 = vsyncadd [#allocation6], %s28
      %s30 = sshll.u32 [#allocation5], 4
      %s31 = int_to_ptr.vmem [resolvable:$true] %s30
      %36 = dma.hbm_to_vmem [thread:$0]  %s1, 1024, %s31, [#allocation6], 64, 64, 4
    $region9: #{tpu_custom_call.1} parent=1 // pred_fallthru
      _
    // Predicated region
    $region10: #{tpu_custom_call.1} parent=1 // pred_check
      _
    $region11: #{tpu_custom_call.1} parent=1 // pred_check_branch
      %38 = sbr.rel (0) target = $region13
    $region12: #{tpu_custom_call.1} parent=1 // pred_region
      %s40 = ssub.s32 128, 128
      %41 = vsyncadd [#allocation6], %s40
      %s43 = sshll.u32 [#allocation7], 4
      %s44 = int_to_ptr.vmem [resolvable:$true] %s43
      %46 = dma.hbm_to_vmem [thread:$0]  %s2, 128, %s44, [#allocation6]
    $region13: #{tpu_custom_call.1} parent=1 // pred_fallthru
      _
    // Predicated region
    $region14: #{tpu_custom_call.1} parent=1 // pred_check
      _
    $region15: #{tpu_custom_call.1} parent=1 // pred_check_branch
      %48 = sbr.rel (0) target = $region17
    $region16: #{tpu_custom_call.1} parent=1 // pred_region
      %s50 = ssub.s32 1024, 1024
      %51 = vsyncadd [#allocation9], %s50
      %s52 = sshll.u32 [#allocation8], 4
      %s53 = int_to_ptr.vmem [resolvable:$true] %s52
      %58 = dma.hbm_to_vmem [thread:$0]  %s3, 1024, %s53, [#allocation9], 64, 64, 4
    $region17: #{tpu_custom_call.1} parent=1 // pred_fallthru
      _
    // Predicated region
    $region18: #{tpu_custom_call.1} parent=1 // pred_check
      _
    $region19: #{tpu_custom_call.1} parent=1 // pred_check_branch
      %60 = sbr.rel (0) target = $region21
    $region20: #{tpu_custom_call.1} parent=1 // pred_region
      %s62 = ssub.s32 1024, 1024
      %63 = vsyncadd [#allocation9], %s62
      %s64 = sshll.u32 [#allocation10], 4
      %s65 = int_to_ptr.vmem [resolvable:$true] %s64
      %70 = dma.hbm_to_vmem [thread:$0]  %s4, 1024, %s65, [#allocation9], 64, 64, 4
    $region21: #{tpu_custom_call.1} parent=1 // pred_fallthru
      _
    // Predicated region
    $region22: #{tpu_custom_call.1} parent=1 // pred_check
      _
    $region23: #{tpu_custom_call.1} parent=1 // pred_check_branch
      %72 = sbr.rel (0) target = $region25
    $region24: #{tpu_custom_call.1} parent=1 // pred_region
      _
    $region25: #{tpu_custom_call.1} parent=1 // pred_fallthru
      _
    // Predicated region
    $region26: #{tpu_custom_call.1} parent=1 // pred_check
      _
    $region27: #{tpu_custom_call.1} parent=1 // pred_check_branch
      %74 = sbr.rel (0) target = $region29
    $region28: #{tpu_custom_call.1} parent=1 // pred_region
      %75 = dma.done [#allocation3], 128
    $region29: #{tpu_custom_call.1} parent=1 // pred_fallthru
      _
    // Predicated region
    $region30: #{tpu_custom_call.1} parent=1 // pred_check
      _
    $region31: #{tpu_custom_call.1} parent=1 // pred_check_branch
      %77 = sbr.rel (0) target = $region33
    $region32: #{tpu_custom_call.1} parent=1 // pred_region
      %78 = dma.done [#allocation6], 1024
    $region33: #{tpu_custom_call.1} parent=1 // pred_fallthru
      _
    // Predicated region
    $region34: #{tpu_custom_call.1} parent=1 // pred_check
      _
    $region35: #{tpu_custom_call.1} parent=1 // pred_check_branch
      %80 = sbr.rel (0) target = $region37
    $region36: #{tpu_custom_call.1} parent=1 // pred_region
      %81 = dma.done [#allocation6], 128
    $region37: #{tpu_custom_call.1} parent=1 // pred_fallthru
      _
    // Predicated region
    $region38: #{tpu_custom_call.1} parent=1 // pred_check
      _
    $region39: #{tpu_custom_call.1} parent=1 // pred_check_branch
      %83 = sbr.rel (0) target = $region41
    $region40: #{tpu_custom_call.1} parent=1 // pred_region
      %84 = dma.done [#allocation9], 1024
    $region41: #{tpu_custom_call.1} parent=1 // pred_fallthru
      _
    // Predicated region
    $region42: #{tpu_custom_call.1} parent=1 // pred_check
      _
    $region43: #{tpu_custom_call.1} parent=1 // pred_check_branch
      %86 = sbr.rel (0) target = $region45
    $region44: #{tpu_custom_call.1} parent=1 // pred_region
      %87 = dma.done [#allocation9], 1024
    $region45: #{tpu_custom_call.1} parent=1 // pred_fallthru
      _
    %v89 = vld [vmem:[#allocation7] sm:$0xff]
    %v90 = vld [vmem:[#allocation2] sm:$0xff]
    %v91 = vpack.c.bf16 %v90, %v90
    %v92 = vld [vmem:[#allocation5] sm:$0xf]
    %v93 = vld [vmem:[#allocation5 + $0x4] sm:$0xf]
    %v94 = vld [vmem:[#allocation5 + $0x8] sm:$0xf]
    %v95 = vld [vmem:[#allocation5 + $0xc] sm:$0xf]
    %v96 = vld [vmem:[#allocation5 + $0x10] sm:$0xf]
    %v97 = vld [vmem:[#allocation5 + $0x14] sm:$0xf]
    %v98 = vld [vmem:[#allocation5 + $0x18] sm:$0xf]
    %v99 = vld [vmem:[#allocation5 + $0x1c] sm:$0xf]
    %v100 = vld [vmem:[#allocation5 + $0x20] sm:$0xf]
    %v101 = vld [vmem:[#allocation5 + $0x24] sm:$0xf]
    %v102 = vld [vmem:[#allocation5 + $0x28] sm:$0xf]
    %v103 = vld [vmem:[#allocation5 + $0x2c] sm:$0xf]
    %v104 = vld [vmem:[#allocation5 + $0x30] sm:$0xf]
    %v105 = vld [vmem:[#allocation5 + $0x34] sm:$0xf]
    %v106 = vld [vmem:[#allocation5 + $0x38] sm:$0xf]
    %v107 = vld [vmem:[#allocation5 + $0x3c] sm:$0xf]
    %v108 = vlaneseq
    %v109 = vshrl.u32 %v108, 7
    %v110 = vsub.s32 0, %v109
    %v111 = vrot.slane %v89, %v110
    %v128 = vunpack.c.l.b16 %v92
    %v129 = vunpack.c.l.b16 %v93
    %v130 = vunpack.c.l.b16 %v94
    %v131 = vunpack.c.l.b16 %v95
    %v132 = vunpack.c.l.b16 %v96
    %v133 = vunpack.c.l.b16 %v97
    %v134 = vunpack.c.l.b16 %v98
    %v135 = vunpack.c.l.b16 %v99
    %v136 = vunpack.c.l.b16 %v100
    %v137 = vunpack.c.l.b16 %v101
    %v138 = vunpack.c.l.b16 %v102
    %v139 = vunpack.c.l.b16 %v103
    %v140 = vunpack.c.l.b16 %v104
    %v141 = vunpack.c.l.b16 %v105
    %v142 = vunpack.c.l.b16 %v106
    %v143 = vunpack.c.l.b16 %v107
    %v144 = vpack.c.b16 %v129, %v128
    %v145 = vpack.c.b16 %v131, %v130
    %v146 = vpack.c.b16 %v133, %v132
    %v147 = vpack.c.b16 %v135, %v134
    %v148 = vpack.c.b16 %v137, %v136
    %v149 = vpack.c.b16 %v139, %v138
    %v150 = vpack.c.b16 %v141, %v140
    %v151 = vpack.c.b16 %v143, %v142
    %160 = vmatprep.subr.bf16.mxu0 0
    %161 = vmatpush1.bf16.msra.mxu0 %v151
    %162 = vmatprep.subr.bf16.mxu0 0
    %163 = vmatpush1.bf16.msra.mxu0 %v150
    %164 = vmatprep.subr.bf16.mxu0 0
    %165 = vmatpush1.bf16.msra.mxu0 %v149
    %166 = vmatprep.subr.bf16.mxu0 0
    %167 = vmatpush1.bf16.msra.mxu0 %v148
    %168 = vmatprep.subr.bf16.mxu0 0
    %169 = vmatpush1.bf16.msra.mxu0 %v147
    %170 = vmatprep.subr.bf16.mxu0 0
    %171 = vmatpush1.bf16.msra.mxu0 %v146
    %172 = vmatprep.subr.bf16.mxu0 0
    %173 = vmatpush1.bf16.msra.mxu0 %v145
    %174 = vmatprep.subr.bf16.mxu0 0
    %175 = vmatpush1.bf16.msra.mxu0 %v144
    %176 = vmatprep.subr.bf16.mxu0 0
    %177 = vmatpush2.bf16.msra.mxu0 0
    %178 = vmatprep.subr.bf16.mxu0 0
    %179 = vmatpush2.bf16.msra.mxu0 0
    %180 = vmatprep.subr.bf16.mxu0 0
    %181 = vmatpush2.bf16.msra.mxu0 0
    %182 = vmatprep.subr.bf16.mxu0 0
    %183 = vmatpush2.bf16.msra.mxu0 0
    %184 = vmatprep.subr.bf16.mxu0 0
    %185 = vmatpush2.bf16.msra.mxu0 0
    %186 = vmatprep.subr.bf16.mxu0 0
    %187 = vmatpush2.bf16.msra.mxu0 0
    %188 = vmatprep.subr.bf16.mxu0 0
    %189 = vmatpush2.bf16.msra.mxu0 0
    %190 = vmatprep.subr.bf16.mxu0 0
    %191 = vmatpush2.bf16.msra.mxu0 0
    %192 = vmatprep.mubr.bf16.mxu0 0
    %193 = vmatmul.mubr.bf16.gmra.mxu0 %v91
    %v194 = vpop.f32.mrf.mxu0
    %v195 = vadd.f32 %v111, %v194
    %v196 = vpop.f32.mrf.mxu0
    %v197 = vpop.f32.mrf.mxu0
    %v198 = vpop.f32.mrf.mxu0
    %199 = vdwg.mxu0
    %200 = vadd.xlane.f32.xlu0 %v195
    %v201 = vpop.xlane.xlu0 %200
    %v202 = vmul.f32 %v201, 0.03125
    %v203 = vmul.f32 %v195, %v195
    %204 = vadd.xlane.f32.xlu0 %v203
    %v205 = vpop.xlane.xlu0 %204
    %v206 = vmul.f32 %v205, 0.03125
    %v207 = vmul.f32 %v202, %v202
    %v208 = vsub.f32 %v206, %v207
    %v209 = vmax.f32 %v208, 0.0
    %v210 = vsub.f32 %v195, %v202
    %v211 = vadd.f32 %v209, 1e-05
    %v212 = vrsqrt.pop %v211
    %v213 = vmul.f32 %v210, %v212
    %v214 = vlaneseq
    %v215 = vshrl.u32 %v214, 7
    %v216 = vsub.s32 1, %v215
    %v217 = vrot.slane %v89, %v216
    %v218 = vmul.f32 %v213, %v217
    %v219 = vlaneseq
    %v220 = vshrl.u32 %v219, 7
    %v221 = vsub.s32 2, %v220
    %v222 = vrot.slane %v89, %v221
    %v223 = vadd.f32 %v218, %v222
    %v224 = vmax.f32 %v223, 0.0
    %v225 = vpack.c.bf16 %v224, %v224
    %v226 = vld [vmem:[#allocation8] sm:$0xf]
    %v227 = vld [vmem:[#allocation8 + $0x4] sm:$0xf]
    %v228 = vld [vmem:[#allocation8 + $0x8] sm:$0xf]
    %v229 = vld [vmem:[#allocation8 + $0xc] sm:$0xf]
    %v230 = vld [vmem:[#allocation8 + $0x10] sm:$0xf]
    %v231 = vld [vmem:[#allocation8 + $0x14] sm:$0xf]
    %v232 = vld [vmem:[#allocation8 + $0x18] sm:$0xf]
    %v233 = vld [vmem:[#allocation8 + $0x1c] sm:$0xf]
    %v234 = vld [vmem:[#allocation8 + $0x20] sm:$0xf]
    %v235 = vld [vmem:[#allocation8 + $0x24] sm:$0xf]
    %v236 = vld [vmem:[#allocation8 + $0x28] sm:$0xf]
    %v237 = vld [vmem:[#allocation8 + $0x2c] sm:$0xf]
    %v238 = vld [vmem:[#allocation8 + $0x30] sm:$0xf]
    %v239 = vld [vmem:[#allocation8 + $0x34] sm:$0xf]
    %v240 = vld [vmem:[#allocation8 + $0x38] sm:$0xf]
    %v241 = vld [vmem:[#allocation8 + $0x3c] sm:$0xf]
    %v242 = vlaneseq
    %v243 = vshrl.u32 %v242, 7
    %v244 = vsub.s32 3, %v243
    %v245 = vrot.slane %v89, %v244
    %v262 = vunpack.c.l.b16 %v226
    %v263 = vunpack.c.l.b16 %v227
    %v264 = vunpack.c.l.b16 %v228
    %v265 = vunpack.c.l.b16 %v229
    %v266 = vunpack.c.l.b16 %v230
    %v267 = vunpack.c.l.b16 %v231
    %v268 = vunpack.c.l.b16 %v232
    %v269 = vunpack.c.l.b16 %v233
    %v270 = vunpack.c.l.b16 %v234
    %v271 = vunpack.c.l.b16 %v235
    %v272 = vunpack.c.l.b16 %v236
    %v273 = vunpack.c.l.b16 %v237
    %v274 = vunpack.c.l.b16 %v238
    %v275 = vunpack.c.l.b16 %v239
    %v276 = vunpack.c.l.b16 %v240
    %v277 = vunpack.c.l.b16 %v241
    %v278 = vpack.c.b16 %v263, %v262
    %v279 = vpack.c.b16 %v265, %v264
    %v280 = vpack.c.b16 %v267, %v266
    %v281 = vpack.c.b16 %v269, %v268
    %v282 = vpack.c.b16 %v271, %v270
    %v283 = vpack.c.b16 %v273, %v272
    %v284 = vpack.c.b16 %v275, %v274
    %v285 = vpack.c.b16 %v277, %v276
    %294 = vmatprep.subr.bf16.mxu0 0
    %295 = vmatpush1.bf16.msra.mxu0 %v285
    %296 = vmatprep.subr.bf16.mxu0 0
    %297 = vmatpush1.bf16.msra.mxu0 %v284
    %298 = vmatprep.subr.bf16.mxu0 0
    %299 = vmatpush1.bf16.msra.mxu0 %v283
    %300 = vmatprep.subr.bf16.mxu0 0
    %301 = vmatpush1.bf16.msra.mxu0 %v282
    %302 = vmatprep.subr.bf16.mxu0 0
    %303 = vmatpush1.bf16.msra.mxu0 %v281
    %304 = vmatprep.subr.bf16.mxu0 0
    %305 = vmatpush1.bf16.msra.mxu0 %v280
    %306 = vmatprep.subr.bf16.mxu0 0
    %307 = vmatpush1.bf16.msra.mxu0 %v279
    %308 = vmatprep.subr.bf16.mxu0 0
    %309 = vmatpush1.bf16.msra.mxu0 %v278
    %310 = vmatprep.subr.bf16.mxu0 0
    %311 = vmatpush2.bf16.msra.mxu0 0
    %312 = vmatprep.subr.bf16.mxu0 0
    %313 = vmatpush2.bf16.msra.mxu0 0
    %314 = vmatprep.subr.bf16.mxu0 0
    %315 = vmatpush2.bf16.msra.mxu0 0
    %316 = vmatprep.subr.bf16.mxu0 0
    %317 = vmatpush2.bf16.msra.mxu0 0
    %318 = vmatprep.subr.bf16.mxu0 0
    %319 = vmatpush2.bf16.msra.mxu0 0
    %320 = vmatprep.subr.bf16.mxu0 0
    %321 = vmatpush2.bf16.msra.mxu0 0
    %322 = vmatprep.subr.bf16.mxu0 0
    %323 = vmatpush2.bf16.msra.mxu0 0
    %324 = vmatprep.subr.bf16.mxu0 0
    %325 = vmatpush2.bf16.msra.mxu0 0
    %326 = vmatprep.mubr.bf16.mxu0 0
    %327 = vmatmul.mubr.bf16.gmra.mxu0 %v225
    %v328 = vpop.f32.mrf.mxu0
    %v329 = vadd.f32 %v245, %v328
    %v330 = vpop.f32.mrf.mxu0
    %v331 = vpop.f32.mrf.mxu0
    %v332 = vpop.f32.mrf.mxu0
    %333 = vdwg.mxu0
    %334 = vadd.xlane.f32.xlu0 %v329
    %v335 = vpop.xlane.xlu0 %334
    %v336 = vmul.f32 %v335, 0.03125
    %v337 = vmul.f32 %v329, %v329
    %338 = vadd.xlane.f32.xlu0 %v337
    %v339 = vpop.xlane.xlu0 %338
    %v340 = vmul.f32 %v339, 0.03125
    %v341 = vmul.f32 %v336, %v336
    %v342 = vsub.f32 %v340, %v341
    %v343 = vmax.f32 %v342, 0.0
    %v344 = vsub.f32 %v329, %v336
    %v345 = vadd.f32 %v343, 1e-05
    %v346 = vrsqrt.pop %v345
    %v347 = vmul.f32 %v344, %v346
    %v348 = vlaneseq
    %v349 = vshrl.u32 %v348, 7
    %v350 = vsub.s32 4, %v349
    %v351 = vrot.slane %v89, %v350
    %v352 = vmul.f32 %v347, %v351
    %v353 = vlaneseq
    %v354 = vshrl.u32 %v353, 7
    %v355 = vsub.s32 5, %v354
    %v356 = vrot.slane %v89, %v355
    %v357 = vadd.f32 %v352, %v356
    %v358 = vmax.f32 %v357, 0.0
    %v359 = vpack.c.bf16 %v358, %v358
    %v360 = vld [vmem:[#allocation10] sm:$0xf]
    %v361 = vld [vmem:[#allocation10 + $0x4] sm:$0xf]
    %v362 = vld [vmem:[#allocation10 + $0x8] sm:$0xf]
    %v363 = vld [vmem:[#allocation10 + $0xc] sm:$0xf]
    %v364 = vld [vmem:[#allocation10 + $0x10] sm:$0xf]
    %v365 = vld [vmem:[#allocation10 + $0x14] sm:$0xf]
    %v366 = vld [vmem:[#allocation10 + $0x18] sm:$0xf]
    %v367 = vld [vmem:[#allocation10 + $0x1c] sm:$0xf]
    %v368 = vld [vmem:[#allocation10 + $0x20] sm:$0xf]
    %v369 = vld [vmem:[#allocation10 + $0x24] sm:$0xf]
    %v370 = vld [vmem:[#allocation10 + $0x28] sm:$0xf]
    %v371 = vld [vmem:[#allocation10 + $0x2c] sm:$0xf]
    %v372 = vld [vmem:[#allocation10 + $0x30] sm:$0xf]
    %v373 = vld [vmem:[#allocation10 + $0x34] sm:$0xf]
    %v374 = vld [vmem:[#allocation10 + $0x38] sm:$0xf]
    %v375 = vld [vmem:[#allocation10 + $0x3c] sm:$0xf]
    %v376 = vld [vmem:[%s5] sm:$0x1]
    %v378 = vlaneseq
    %v379 = vshrl.u32 %v378, 7
    %v380 = vsub.s32 0, %v379
    %v381 = vrot.slane %v376, %v380
    %v399 = vunpack.c.l.b16 %v360
    %v400 = vunpack.c.l.b16 %v361
    %v401 = vunpack.c.l.b16 %v362
    %v402 = vunpack.c.l.b16 %v363
    %v403 = vunpack.c.l.b16 %v364
    %v404 = vunpack.c.l.b16 %v365
    %v405 = vunpack.c.l.b16 %v366
    %v406 = vunpack.c.l.b16 %v367
    %v407 = vunpack.c.l.b16 %v368
    %v408 = vunpack.c.l.b16 %v369
    %v409 = vunpack.c.l.b16 %v370
    %v410 = vunpack.c.l.b16 %v371
    %v411 = vunpack.c.l.b16 %v372
    %v412 = vunpack.c.l.b16 %v373
    %v413 = vunpack.c.l.b16 %v374
    %v414 = vunpack.c.l.b16 %v375
    %v415 = vpack.c.b16 %v400, %v399
    %v416 = vpack.c.b16 %v402, %v401
    %v417 = vpack.c.b16 %v404, %v403
    %v418 = vpack.c.b16 %v406, %v405
    %v419 = vpack.c.b16 %v408, %v407
    %v420 = vpack.c.b16 %v410, %v409
    %v421 = vpack.c.b16 %v412, %v411
    %v422 = vpack.c.b16 %v414, %v413
    %431 = vmatprep.subr.bf16.mxu0 0
    %432 = vmatpush1.bf16.msra.mxu0 %v422
    %433 = vmatprep.subr.bf16.mxu0 0
    %434 = vmatpush1.bf16.msra.mxu0 %v421
    %435 = vmatprep.subr.bf16.mxu0 0
    %436 = vmatpush1.bf16.msra.mxu0 %v420
    %437 = vmatprep.subr.bf16.mxu0 0
    %438 = vmatpush1.bf16.msra.mxu0 %v419
    %439 = vmatprep.subr.bf16.mxu0 0
    %440 = vmatpush1.bf16.msra.mxu0 %v418
    %441 = vmatprep.subr.bf16.mxu0 0
    %442 = vmatpush1.bf16.msra.mxu0 %v417
    %443 = vmatprep.subr.bf16.mxu0 0
    %444 = vmatpush1.bf16.msra.mxu0 %v416
    %445 = vmatprep.subr.bf16.mxu0 0
    %446 = vmatpush1.bf16.msra.mxu0 %v415
    %447 = vmatprep.subr.bf16.mxu0 0
    %448 = vmatpush2.bf16.msra.mxu0 0
    %449 = vmatprep.subr.bf16.mxu0 0
    %450 = vmatpush2.bf16.msra.mxu0 0
    %451 = vmatprep.subr.bf16.mxu0 0
    %452 = vmatpush2.bf16.msra.mxu0 0
    %453 = vmatprep.subr.bf16.mxu0 0
    %454 = vmatpush2.bf16.msra.mxu0 0
    %455 = vmatprep.subr.bf16.mxu0 0
    %456 = vmatpush2.bf16.msra.mxu0 0
    %457 = vmatprep.subr.bf16.mxu0 0
    %458 = vmatpush2.bf16.msra.mxu0 0
    %459 = vmatprep.subr.bf16.mxu0 0
    %460 = vmatpush2.bf16.msra.mxu0 0
    %461 = vmatprep.subr.bf16.mxu0 0
    %462 = vmatpush2.bf16.msra.mxu0 0
    %463 = vmatprep.mubr.bf16.mxu0 0
    %464 = vmatmul.mubr.bf16.gmra.mxu0 %v359
    %v465 = vpop.f32.mrf.mxu0
    %v466 = vadd.f32 %v381, %v465
    %v467 = vpop.f32.mrf.mxu0
    %v468 = vpop.f32.mrf.mxu0
    %v469 = vpop.f32.mrf.mxu0
    %470 = vdwg.mxu0
    %471 = vst [vmem:[#allocation11] sm:$0xff] %v466
    // Predicated region
    $region46: #{tpu_custom_call.1} parent=1 // pred_check
      _
    $region47: #{tpu_custom_call.1} parent=1 // pred_check_branch
      %473 = sbr.rel (0) target = $region49
    $region48: #{tpu_custom_call.1} parent=1 // pred_region
      %s475 = ssub.s32 128, 128
      %476 = vsyncadd [#allocation4], %s475
      %s478 = sshll.u32 [#allocation11], 4
      %s479 = int_to_ptr.vmem [resolvable:$true] %s478
      %481 = dma.vmem_to_hbm [thread:$0]  %s479, 128, %s6, [#allocation4]
    $region49: #{tpu_custom_call.1} parent=1 // pred_fallthru
      _
    // Predicated region
    $region50: #{tpu_custom_call.1} parent=1 // pred_check
      _
    $region51: #{tpu_custom_call.1} parent=1 // pred_check_branch
      %483 = sbr.rel (0) target = $region53
    $region52: #{tpu_custom_call.1} parent=1 // pred_region
      %484 = dma.done [#allocation4], 128
    $region53: #{tpu_custom_call.1} parent=1 // pred_fallthru
      _
    %485 = vsyncpa [#allocation3], 1
    %486 = vsyncpa [#allocation6], 1
    %487 = vsyncpa [#allocation9], 1
    %488 = vsyncpa [#allocation4], 1

</llo_original>
